<compile_context>
chip_gen: v7x
topology: tpu7x:2x2x1
jax: 0.10.0
libtpu: 0.0.40
codegen_flags: <defaults>
</compile_context>

<pallas_src>
import jax
import jax.numpy as jnp
from jax.experimental import pallas as pl
from jax.experimental.pallas import tpu as pltpu


def _skip_kernel(alpha_ref, x_ref, wt_ref, b_ref, o_ref):
    # alpha_ref: SMEM (1,) f32
    # x_ref: (TM, C)   wt_ref: (C, C) == W^T   b_ref: (1, C)   o_ref: (TM, C)
    alpha = alpha_ref[0]                       # read once
    one_minus_alpha = 1.0 - alpha              # hoisted scalar
    x = x_ref[...]
    x_f32 = x.astype(jnp.float32)
    # Cast x to the weight dtype only for the MXU dot (bf16-resident weights run
    # the MXU at native rate); accumulate in f32.
    a = jnp.dot(x.astype(wt_ref.dtype), wt_ref[...],
                preferred_element_type=jnp.float32)
    a = jnp.maximum(a + b_ref[...].astype(jnp.float32), 0.0)   # bias + ReLU
    o_ref[...] = (alpha * a + one_minus_alpha * x_f32).astype(o_ref.dtype)


def _round_up(n, m):
    return ((n + m - 1) // m) * m


def _pick_tile(M, C, x_dtype, w_dtype, single_buffer_resident):
    """Byte-sized M tile + vmem limit, aware of the TPU generation's VMEM."""
    x_item = jnp.dtype(x_dtype).itemsize
    w_item = jnp.dtype(w_dtype).itemsize
    w_bufs = 1 if single_buffer_resident else 2
    fixed = w_bufs * (C * C * w_item + C * 4)          # resident W^T (+ bias)

    try:
        vmem_cap = int(pltpu.get_tpu_info().vmem_capacity_bytes)
    except Exception:
        vmem_cap = 64 << 20                            # conservative: v7x per-TC
    # ~48 MiB budget on v7x (64 MiB VMEM), ~102 MiB on v5e/v6e (128 MiB VMEM).
    budget = max(min(int(vmem_cap * 0.8), vmem_cap - (16 << 20)), 24 << 20)

    stream_bytes_per_row = 4 * C * x_item              # x + out, double-buffered
    avail = budget - fixed
    # TODO(synk): if `fixed` alone exceeds the budget (very large C) the
    # resident weight does not fit; needs the K/N-tiled accumulator variant.
    rows = avail // stream_bytes_per_row if avail > 0 else 128
    tm = max((rows // 128) * 128, 128)

    # Keep several grid steps (pipeline overlap + megacore sharding on v7x) as
    # long as each x block stays >= ~2 MiB so the ~0.35us/step cost is amortized.
    rows_2mib = _round_up(max((2 << 20) // (C * x_item), 1), 128)
    rows_8steps = _round_up(pl.cdiv(M, 8), 128)
    tm = min(tm, max(rows_8steps, rows_2mib))
    # Never larger than the problem; keep the sublane (second-to-last) block dim
    # a multiple of 8 (ragged last block only), or equal to a tiny full M.
    if M >= 8:
        tm = max(min(tm, (M // 8) * 8), 8)
    else:
        tm = M

    needed = fixed + 2 * 2 * tm * C * x_item           # dbl-buffered x and out
    vmem_limit = int(min(max(needed + (4 << 20), 32 << 20), vmem_cap))
    return tm, vmem_limit


def learnable_skip_layer(x, weight_t, bias, alpha):
    """Forward pass of LearnableSkipLayer.

    x:        (..., C)
    weight_t: (C, C) = W^T of the PyTorch Linear weight, pre-transposed ONCE at
              parameter init (store it bf16 there for large C on v6e/v7x).
    bias:     (C,)
    alpha:    scalar / (1,) learnable blend factor.
    """
    orig_shape = x.shape
    C = orig_shape[-1]
    x2d = x.reshape(-1, C)
    M = x2d.shape[0]
    b2d = bias.reshape(1, C)
    alpha = jnp.asarray(alpha, dtype=jnp.float32).reshape(1)

    def call(single_buffer_resident):
        tm, vmem_limit = _pick_tile(M, C, x.dtype, weight_t.dtype,
                                    single_buffer_resident)
        resident_kwargs = (
            {"pipeline_mode": pl.Buffered(1)} if single_buffer_resident else {})
        return pl.pallas_call(
            _skip_kernel,
            out_shape=jax.ShapeDtypeStruct((M, C), x.dtype),
            grid_spec=pltpu.PrefetchScalarGridSpec(
                num_scalar_prefetch=0,
                grid=(pl.cdiv(M, tm),),
                in_specs=[
                    pl.BlockSpec(memory_space=pltpu.SMEM),            # alpha
                    pl.BlockSpec((tm, C), lambda i: (i, 0)),          # x (streamed)
                    pl.BlockSpec((C, C), lambda i: (0, 0),            # W^T (resident)
                                 **resident_kwargs),
                    pl.BlockSpec((1, C), lambda i: (0, 0),            # bias (resident)
                                 **resident_kwargs),
                ],
                out_specs=pl.BlockSpec((tm, C), lambda i: (i, 0)),
            ),
            compiler_params=pltpu.CompilerParams(
                dimension_semantics=("parallel",),
                vmem_limit_bytes=vmem_limit),
        )(alpha, x2d, weight_t, b2d)

    try:
        out = call(True)      # single-buffered resident W^T/bias (frees VMEM)
    except Exception:         # Buffered(1) unsupported -> default double buffering
        out = call(False)
    return out.reshape(orig_shape)


def reference(x, weight, bias, alpha):
    a = jnp.maximum(jnp.einsum("...c,dc->...d", x, weight) + bias, 0.0)
    return alpha * a + (1.0 - alpha) * x


if __name__ == "__main__":
    key = jax.random.PRNGKey(0)
    k_x, k_w, k_b = jax.random.split(key, 3)

    batch, seq, channels = 2, 8, 32
    x = jax.random.normal(k_x, (batch, seq, channels), dtype=jnp.float32)

    # Deterministic parameter "init".  The transpose (and any dtype cast / lane
    # padding for large C) happens ONCE here, not on every forward call.
    weight = jax.random.normal(k_w, (channels, channels), dtype=jnp.float32) * 0.1
    bias = jax.random.normal(k_b, (channels,), dtype=jnp.float32) * 0.1
    weight_t = weight.T
    alpha = jnp.array([0.3], dtype=jnp.float32)

    out = jax.block_until_ready(learnable_skip_layer(x, weight_t, bias, alpha))
    ref = reference(x, weight, bias, alpha[0])
    assert out.shape == x.shape
    assert jnp.allclose(out, ref, atol=1e-5, rtol=1e-5)

    # alpha = 0 (identity skip, as at PyTorch init: nn.Parameter(zeros(1))).
    out0 = jax.block_until_ready(
        learnable_skip_layer(x, weight_t, bias, jnp.zeros((1,), jnp.float32)))
    assert jnp.allclose(out0, x, atol=1e-6)

    # Ragged M (batch*seq not tile-aligned) -- handled without any pad/slice pass.
    x_odd = jax.random.normal(k_x, (3, 5, channels), dtype=jnp.float32)
    out_odd = jax.block_until_ready(learnable_skip_layer(x_odd, weight_t, bias, alpha))
    assert jnp.allclose(out_odd, reference(x_odd, weight, bias, alpha[0]),
                        atol=1e-5, rtol=1e-5)

    # bf16-resident weight path (recommended for large C on v6e/v7x): the kernel
    # casts x to bf16 only for the MXU dot; the skip blend stays f32.
    weight_t_bf16 = weight_t.astype(jnp.bfloat16)
    out_bf = jax.block_until_ready(learnable_skip_layer(x, weight_t_bf16, bias, alpha))
    ref_bf = reference(x, weight.astype(jnp.bfloat16).astype(jnp.float32), bias, alpha[0])
    assert jnp.allclose(out_bf, ref_bf, atol=5e-2, rtol=5e-2)

    print("KERNEL_OK")
</pallas_src>

<mosaic_0001>
module attributes {stable_mosaic.version = 11 : i64} {
  func.func @_skip_kernel(%arg0: i32, %arg1: memref<1xf32, #tpu.memory_space<smem>>, %arg2: memref<16x32xf32, #tpu.memory_space<vmem>>, %arg3: memref<32x32xf32, #tpu.memory_space<vmem>>, %arg4: memref<1x32xf32, #tpu.memory_space<vmem>>, %arg5: memref<16x32xf32, #tpu.memory_space<vmem>>) attributes {dimension_semantics = [#tpu.dimension_semantics<parallel>], iteration_bounds = array<i64: 1>, scalar_prefetch = 0 : i64, scratch_operands = 0 : i64, tpu.core_type = #tpu.core_type<tc>, window_params = [{transform_indices = @transform_0, window_bounds = array<i64: 1>}, {transform_indices = @transform_1, window_bounds = array<i64: 16, 32>}, {pipeline_mode = #tpu.pipeline_mode<synchronous>, transform_indices = @transform_2, window_bounds = array<i64: 32, 32>}, {pipeline_mode = #tpu.pipeline_mode<synchronous>, transform_indices = @transform_3, window_bounds = array<i64: 1, 32>}, {transform_indices = @transform_4, window_bounds = array<i64: 16, 32>}]} {
    %c0 = arith.constant 0 : index
    %0 = memref.load %arg1[%c0] : memref<1xf32, #tpu.memory_space<smem>>
    %cst = arith.constant 1.000000e+00 : f32
    %1 = arith.subf %cst, %0 : f32
    %c0_0 = arith.constant 0 : index
    %c0_1 = arith.constant 0 : index
    %2 = vector.load %arg2[%c0_0, %c0_1] : memref<16x32xf32, #tpu.memory_space<vmem>>, vector<16x32xf32>
    %c0_2 = arith.constant 0 : index
    %c0_3 = arith.constant 0 : index
    %3 = vector.load %arg3[%c0_2, %c0_3] : memref<32x32xf32, #tpu.memory_space<vmem>>, vector<32x32xf32>
    %cst_4 = arith.constant dense<0.000000e+00> : vector<16x32xf32>
    %4 = tpu.matmul %2, %3, %cst_4 {dimension_numbers = #tpu.dot_dimension_numbers<[1], [0], [0], [1], [0, 0, 1, 1], [], []>} : vector<16x32xf32>, vector<32x32xf32>, vector<16x32xf32> -> vector<16x32xf32>
    %c0_5 = arith.constant 0 : index
    %c0_6 = arith.constant 0 : index
    %5 = vector.load %arg4[%c0_5, %c0_6] : memref<1x32xf32, #tpu.memory_space<vmem>>, vector<1x32xf32>
    %6 = vector.broadcast %5 : vector<1x32xf32> to vector<16x32xf32>
    %7 = arith.addf %4, %6 : vector<16x32xf32>
    %cst_7 = arith.constant 0.000000e+00 : f32
    %8 = vector.broadcast %cst_7 : f32 to vector<16x32xf32>
    %9 = arith.maximumf %7, %8 : vector<16x32xf32>
    %10 = vector.broadcast %0 : f32 to vector<16x32xf32>
    %11 = arith.mulf %10, %9 : vector<16x32xf32>
    %12 = vector.broadcast %1 : f32 to vector<16x32xf32>
    %13 = arith.mulf %12, %2 : vector<16x32xf32>
    %14 = arith.addf %11, %13 : vector<16x32xf32>
    %c0_8 = arith.constant 0 : index
    %c0_9 = arith.constant 0 : index
    %15 = vector.load %arg5[%c0_8, %c0_9] : memref<16x32xf32, #tpu.memory_space<vmem>>, vector<16x32xf32>
    tpu.vector_store %arg5[%c0_8, %c0_9], %14 {strides = array<i32>} : memref<16x32xf32, #tpu.memory_space<vmem>>, vector<16x32xf32>,
    return
  }
  func.func @transform_0(%arg0: i32) -> i32 {
    %c0_i32 = arith.constant 0 : i32
    %c0_i32_0 = arith.constant 0 : i32
    return %c0_i32 : i32
  }
  func.func @transform_1(%arg0: i32) -> (i32, i32) {
    %c0_i32 = arith.constant 0 : i32
    %c0_i32_0 = arith.constant 0 : i32
    return %arg0, %c0_i32 : i32, i32
  }
  func.func @transform_2(%arg0: i32) -> (i32, i32) {
    %c0_i32 = arith.constant 0 : i32
    %c0_i32_0 = arith.constant 0 : i32
    %c0_i32_1 = arith.constant 0 : i32
    return %c0_i32, %c0_i32_0 : i32, i32
  }
  func.func @transform_3(%arg0: i32) -> (i32, i32) {
    %c0_i32 = arith.constant 0 : i32
    %c0_i32_0 = arith.constant 0 : i32
    %c0_i32_1 = arith.constant 0 : i32
    return %c0_i32, %c0_i32_0 : i32, i32
  }
  func.func @transform_4(%arg0: i32) -> (i32, i32) {
    %c0_i32 = arith.constant 0 : i32
    %c0_i32_0 = arith.constant 0 : i32
    return %arg0, %c0_i32 : i32, i32
  }
}

module attributes {stable_mosaic.version = 11 : i64} {
  func.func @_skip_kernel(%arg0: i32, %arg1: memref<1xf32, #tpu.memory_space<smem>>, %arg2: memref<16x32xf32, #tpu.memory_space<vmem>>, %arg3: memref<32x32xf32, #tpu.memory_space<vmem>>, %arg4: memref<1x32xf32, #tpu.memory_space<vmem>>, %arg5: memref<16x32xf32, #tpu.memory_space<vmem>>) attributes {dimension_semantics = [#tpu.dimension_semantics<parallel>], iteration_bounds = array<i64: 1>, scalar_prefetch = 0 : i64, scratch_operands = 0 : i64, tpu.core_type = #tpu.core_type<tc>, window_params = [{transform_indices = @transform_0, window_bounds = array<i64: 1>}, {transform_indices = @transform_1, window_bounds = array<i64: 16, 32>}, {pipeline_mode = #tpu.pipeline_mode<synchronous>, transform_indices = @transform_2, window_bounds = array<i64: 32, 32>}, {pipeline_mode = #tpu.pipeline_mode<synchronous>, transform_indices = @transform_3, window_bounds = array<i64: 1, 32>}, {transform_indices = @transform_4, window_bounds = array<i64: 16, 32>}]} {
    %c0 = arith.constant 0 : index
    %0 = memref.load %arg1[%c0] : memref<1xf32, #tpu.memory_space<smem>>
    %cst = arith.constant 1.000000e+00 : f32
    %1 = arith.subf %cst, %0 : f32
    %c0_0 = arith.constant 0 : index
    %c0_1 = arith.constant 0 : index
    %2 = vector.load %arg2[%c0_0, %c0_1] : memref<16x32xf32, #tpu.memory_space<vmem>>, vector<16x32xf32>
    %c0_2 = arith.constant 0 : index
    %c0_3 = arith.constant 0 : index
    %3 = vector.load %arg3[%c0_2, %c0_3] : memref<32x32xf32, #tpu.memory_space<vmem>>, vector<32x32xf32>
    %cst_4 = arith.constant dense<0.000000e+00> : vector<16x32xf32>
    %4 = tpu.matmul %2, %3, %cst_4 {dimension_numbers = #tpu.dot_dimension_numbers<[1], [0], [0], [1], [0, 0, 1, 1], [], []>} : vector<16x32xf32>, vector<32x32xf32>, vector<16x32xf32> -> vector<16x32xf32>
    %c0_5 = arith.constant 0 : index
    %c0_6 = arith.constant 0 : index
    %5 = vector.load %arg4[%c0_5, %c0_6] : memref<1x32xf32, #tpu.memory_space<vmem>>, vector<1x32xf32>
    %6 = vector.broadcast %5 : vector<1x32xf32> to vector<16x32xf32>
    %7 = arith.addf %4, %6 : vector<16x32xf32>
    %cst_7 = arith.constant 0.000000e+00 : f32
    %8 = vector.broadcast %cst_7 : f32 to vector<16x32xf32>
    %9 = arith.maximumf %7, %8 : vector<16x32xf32>
    %10 = vector.broadcast %0 : f32 to vector<16x32xf32>
    %11 = arith.mulf %10, %9 : vector<16x32xf32>
    %12 = vector.broadcast %1 : f32 to vector<16x32xf32>
    %13 = arith.mulf %12, %2 : vector<16x32xf32>
    %14 = arith.addf %11, %13 : vector<16x32xf32>
    %c0_8 = arith.constant 0 : index
    %c0_9 = arith.constant 0 : index
    %15 = vector.load %arg5[%c0_8, %c0_9] : memref<16x32xf32, #tpu.memory_space<vmem>>, vector<16x32xf32>
    tpu.vector_store %arg5[%c0_8, %c0_9], %14 {strides = array<i32>} : memref<16x32xf32, #tpu.memory_space<vmem>>, vector<16x32xf32>,
    return
  }
  func.func @transform_0(%arg0: i32) -> i32 {
    %c0_i32 = arith.constant 0 : i32
    %c0_i32_0 = arith.constant 0 : i32
    return %c0_i32 : i32
  }
  func.func @transform_1(%arg0: i32) -> (i32, i32) {
    %c0_i32 = arith.constant 0 : i32
    %c0_i32_0 = arith.constant 0 : i32
    return %arg0, %c0_i32 : i32, i32
  }
  func.func @transform_2(%arg0: i32) -> (i32, i32) {
    %c0_i32 = arith.constant 0 : i32
    %c0_i32_0 = arith.constant 0 : i32
    %c0_i32_1 = arith.constant 0 : i32
    return %c0_i32, %c0_i32_0 : i32, i32
  }
  func.func @transform_3(%arg0: i32) -> (i32, i32) {
    %c0_i32 = arith.constant 0 : i32
    %c0_i32_0 = arith.constant 0 : i32
    %c0_i32_1 = arith.constant 0 : i32
    return %c0_i32, %c0_i32_0 : i32, i32
  }
  func.func @transform_4(%arg0: i32) -> (i32, i32) {
    %c0_i32 = arith.constant 0 : i32
    %c0_i32_0 = arith.constant 0 : i32
    return %arg0, %c0_i32 : i32, i32
  }
}

</mosaic_0001>

<llo_original>
// kernel: tpu_custom_call.1
$region0: #{tpu_custom_call.1}
  #allocation0 [shape = 'u32[]', space=smem, size = 0x4, offset = 0x4, fixed_abs, tag = 'smem constant byte address 0x4 - core index']
  #allocation1 [shape = 'u32[144,128]{1,0:T(1,128)}', space=vmem, size = 0x12000, scoped, tag = 'internal scratch']
  #allocation2 [shape = 'f32[1]{0:T(128)S(6)}', space=smem, size = 0x200, scoped, tag = 'scoped memory for tpu_custom_call.1']
  %s0 = inlined_call_operand.<no memory space> [shape: f32[1], index: 0, kind: input, shape index: {}]
  %s1 = inlined_call_operand.hbm [shape: f32[16,32], index: 1, kind: input, shape index: {}]
  %s2 = inlined_call_operand.hbm [shape: f32[32,32], index: 2, kind: input, shape index: {}]
  %s3 = inlined_call_operand.vmem [shape: f32[1,32], index: 3, kind: input, shape index: {}]
  %s4 = inlined_call_operand.hbm [shape: f32[16,32], index: 4, kind: output, shape index: {}]
  %s5 = sld [smem:[#allocation0]]
  $region34: #{tpu_custom_call.1} parent=0
    _
  %s7 = ssub.s32 1, %s5
  %s8 = scalar_select 0, %s7, %s5
  %9 = sst [smem:[#allocation2]] %s0
  $region1: #{tpu_custom_call.1} parent=0
    #allocation3 [shape = 'u8[8192]{0}', space=vmem, size = 0x2000, scoped, tag = 'input window, operand 1, single buffered']
    #allocation4 [shape = 's32[1]{0}', space=sflag, size = 0x4, scoped, tag = 'scoped memory for tpu_custom_call.1']
    #allocation5 [shape = 's32[1]{0}', space=sflag, size = 0x4, scoped, tag = 'scoped memory for tpu_custom_call.1']
    #allocation6 [shape = 'u8[16384]{0}', space=vmem, size = 0x4000, scoped, tag = 'input window, operand 2, single buffered']
    #allocation7 [shape = 's32[1]{0}', space=sflag, size = 0x4, scoped, tag = 'scoped memory for tpu_custom_call.1']
    #allocation8 [shape = 'u8[8192]{0}', space=vmem, size = 0x2000, scoped, tag = 'output window, operand 0, single buffered']
    %10 = vsyncpa [#allocation4], 0
    %11 = vsyncpa [#allocation7], 0
    %12 = vsyncpa [#allocation5], 0
    // Predicated region
    $region2: #{tpu_custom_call.1} parent=1 // pred_check
      _
    $region3: #{tpu_custom_call.1} parent=1 // pred_check_branch
      %14 = sbr.rel (0) target = $region5
    $region4: #{tpu_custom_call.1} parent=1 // pred_region
      _
    $region5: #{tpu_custom_call.1} parent=1 // pred_fallthru
      _
    // Predicated region
    $region6: #{tpu_custom_call.1} parent=1 // pred_check
      _
    $region7: #{tpu_custom_call.1} parent=1 // pred_check_branch
      %16 = sbr.rel (0) target = $region9
    $region8: #{tpu_custom_call.1} parent=1 // pred_region
      %s18 = ssub.s32 256, 256
      %19 = vsyncadd [#allocation4], %s18
      %s20 = sshll.u32 [#allocation3], 4
      %s21 = int_to_ptr.vmem [resolvable:$true] %s20
      %26 = dma.hbm_to_vmem [thread:$0]  %s1, 256, %s21, [#allocation4], 128, 128, 8
    $region9: #{tpu_custom_call.1} parent=1 // pred_fallthru
      _
    // Predicated region
    $region10: #{tpu_custom_call.1} parent=1 // pred_check
      _
    $region11: #{tpu_custom_call.1} parent=1 // pred_check_branch
      %28 = sbr.rel (0) target = $region13
    $region12: #{tpu_custom_call.1} parent=1 // pred_region
      %s30 = ssub.s32 512, 512
      %31 = vsyncadd [#allocation7], %s30
      %s32 = sshll.u32 [#allocation6], 4
      %s33 = int_to_ptr.vmem [resolvable:$true] %s32
      %38 = dma.hbm_to_vmem [thread:$0]  %s2, 512, %s33, [#allocation7], 128, 128, 8
    $region13: #{tpu_custom_call.1} parent=1 // pred_fallthru
      _
    // Predicated region
    $region14: #{tpu_custom_call.1} parent=1 // pred_check
      _
    $region15: #{tpu_custom_call.1} parent=1 // pred_check_branch
      %40 = sbr.rel (0) target = $region17
    $region16: #{tpu_custom_call.1} parent=1 // pred_region
      _
    $region17: #{tpu_custom_call.1} parent=1 // pred_fallthru
      _
    // Predicated region
    $region18: #{tpu_custom_call.1} parent=1 // pred_check
      _
    $region19: #{tpu_custom_call.1} parent=1 // pred_check_branch
      %42 = sbr.rel (0) target = $region21
    $region20: #{tpu_custom_call.1} parent=1 // pred_region
      %43 = dma.done [#allocation4], 256
    $region21: #{tpu_custom_call.1} parent=1 // pred_fallthru
      _
    // Predicated region
    $region22: #{tpu_custom_call.1} parent=1 // pred_check
      _
    $region23: #{tpu_custom_call.1} parent=1 // pred_check_branch
      %45 = sbr.rel (0) target = $region25
    $region24: #{tpu_custom_call.1} parent=1 // pred_region
      %46 = dma.done [#allocation7], 512
    $region25: #{tpu_custom_call.1} parent=1 // pred_fallthru
      _
    %s47 = sld [smem:[#allocation2]]
    %s48 = ssub.f32 1.0, %s47
    %v49 = vld [vmem:[#allocation3] sm:$0xff]
    %v50 = vld [vmem:[#allocation3 + $0x8] sm:$0xff]
    %v51 = vld [vmem:[#allocation6] sm:$0xff]
    %v52 = vld [vmem:[#allocation6 + $0x8] sm:$0xff]
    %v53 = vld [vmem:[#allocation6 + $0x10] sm:$0xff]
    %v54 = vld [vmem:[#allocation6 + $0x18] sm:$0xff]
    %v55 = vld [vmem:[%s3] sm:$0x1]
    %v57 = vlaneseq
    %v58 = vshrl.u32 %v57, 7
    %v59 = vsub.s32 0, %v58
    %v60 = vrot.slane %v55, %v59
    %vm62 = vcmask 261120
    %v64 = vsel %vm62, %v49, 0
    %v67 = vsel %vm62, %v50, 0
    %69 = vmatprep.subr.mxu0 0.0
    %70 = vmatpush1.msra.mxu0 %v51
    %71 = vmatprep.subr.mxu0 0.0
    %72 = vmatpush1.msra.mxu0 %v52
    %73 = vmatprep.subr.mxu0 0.0
    %74 = vmatpush1.msra.mxu0 %v53
    %75 = vmatprep.subr.mxu0 0.0
    %76 = vmatpush1.msra.mxu0 %v54
    %77 = vmatprep.subr.mxu0 0.0
    %78 = vmatpush1.msra.mxu0 0.0
    %79 = vmatprep.subr.mxu0 0.0
    %80 = vmatpush1.msra.mxu0 0.0
    %81 = vmatprep.subr.mxu0 0.0
    %82 = vmatpush1.msra.mxu0 0.0
    %83 = vmatprep.subr.mxu0 0.0
    %84 = vmatpush1.msra.mxu0 0.0
    %85 = vmatprep.subr.mxu0 0.0
    %86 = vmatpush1.msra.mxu0 0.0
    %87 = vmatprep.subr.mxu0 0.0
    %88 = vmatpush1.msra.mxu0 0.0
    %89 = vmatprep.subr.mxu0 0.0
    %90 = vmatpush1.msra.mxu0 0.0
    %91 = vmatprep.subr.mxu0 0.0
    %92 = vmatpush1.msra.mxu0 0.0
    %93 = vmatprep.subr.mxu0 0.0
    %94 = vmatpush1.msra.mxu0 0.0
    %95 = vmatprep.subr.mxu0 0.0
    %96 = vmatpush1.msra.mxu0 0.0
    %97 = vmatprep.subr.mxu0 0.0
    %98 = vmatpush1.msra.mxu0 0.0
    %99 = vmatprep.subr.mxu0 0.0
    %100 = vmatpush1.msra.mxu0 0.0
    %101 = vmatprep.subr.mxu0 0.0
    %102 = vmatpush1.msra.mxu0 0.0
    %103 = vmatprep.subr.mxu0 0.0
    %104 = vmatpush1.msra.mxu0 0.0
    %105 = vmatprep.subr.mxu0 0.0
    %106 = vmatpush1.msra.mxu0 0.0
    %107 = vmatprep.subr.mxu0 0.0
    %108 = vmatpush1.msra.mxu0 0.0
    %109 = vmatprep.subr.mxu0 0.0
    %110 = vmatpush1.msra.mxu0 0.0
    %111 = vmatprep.subr.mxu0 0.0
    %112 = vmatpush1.msra.mxu0 0.0
    %113 = vmatprep.subr.mxu0 0.0
    %114 = vmatpush1.msra.mxu0 0.0
    %115 = vmatprep.subr.mxu0 0.0
    %116 = vmatpush1.msra.mxu0 0.0
    %117 = vmatprep.subr.mxu0 0.0
    %118 = vmatpush1.msra.mxu0 0.0
    %119 = vmatprep.subr.mxu0 0.0
    %120 = vmatpush1.msra.mxu0 0.0
    %121 = vmatprep.subr.mxu0 0.0
    %122 = vmatpush1.msra.mxu0 0.0
    %123 = vmatprep.subr.mxu0 0.0
    %124 = vmatpush1.msra.mxu0 0.0
    %125 = vmatprep.subr.mxu0 0.0
    %126 = vmatpush1.msra.mxu0 0.0
    %127 = vmatprep.subr.mxu0 0.0
    %128 = vmatpush1.msra.mxu0 0.0
    %129 = vmatprep.subr.mxu0 0.0
    %130 = vmatpush1.msra.mxu0 0.0
    %131 = vmatprep.subr.mxu0 0.0
    %132 = vmatpush1.msra.mxu0 0.0
    %133 = vmatprep.mubr.f32.mxu0 0.0
    %134 = vmatmul.mubr.f32.gmra.mrb[0].mxu0 %v64
    %v135 = vpop.f32.mrb[0].mxu0
    %v136 = vadd.f32 %v60, %v135
    %v137 = vpop.f32.mrb[0].mxu0
    %138 = vmatprep.mubr.f32.mxu0 0.0
    %139 = vmatmul.mubr.f32.gmra.mrb[0].mxu0 %v67
    %v140 = vpop.f32.mrb[0].mxu0
    %v141 = vadd.f32 %v60, %v140
    %v142 = vpop.f32.mrb[0].mxu0
    %143 = vdwg.mxu0
    %v144 = vmax.f32 %v136, 0.0
    %v145 = vmax.f32 %v141, 0.0
    %v146 = vstv %s47
    %v147 = vmul.f32 %v146, %v144
    %v148 = vmul.f32 %v146, %v145
    %v149 = vstv %s48
    %v150 = vmul.f32 %v149, %v49
    %v151 = vmul.f32 %v149, %v50
    %v152 = vadd.f32 %v147, %v150
    %v153 = vadd.f32 %v148, %v151
    %154 = vst.msk [vmem:[#allocation8] sm:$0xff] %vm62, %v152
    %155 = vst.msk [vmem:[#allocation8 + $0x8] sm:$0xff] %vm62, %v153
    // Predicated region
    $region26: #{tpu_custom_call.1} parent=1 // pred_check
      _
    $region27: #{tpu_custom_call.1} parent=1 // pred_check_branch
      %157 = sbr.rel (0) target = $region29
    $region28: #{tpu_custom_call.1} parent=1 // pred_region
      %s159 = ssub.s32 256, 256
      %160 = vsyncadd [#allocation5], %s159
      %s161 = sshll.u32 [#allocation8], 4
      %s162 = int_to_ptr.vmem [resolvable:$true] %s161
      %167 = dma.vmem_to_hbm [thread:$0]  %s162, 256, %s4, [#allocation5], 128, 128, 8
    $region29: #{tpu_custom_call.1} parent=1 // pred_fallthru
      _
    // Predicated region
    $region30: #{tpu_custom_call.1} parent=1 // pred_check
      _
    $region31: #{tpu_custom_call.1} parent=1 // pred_check_branch
      %169 = sbr.rel (0) target = $region33
    $region32: #{tpu_custom_call.1} parent=1 // pred_region
      %170 = dma.done [#allocation5], 256
    $region33: #{tpu_custom_call.1} parent=1 // pred_fallthru
      _
    %171 = vsyncpa [#allocation4], 1
    %172 = vsyncpa [#allocation7], 1
    %173 = vsyncpa [#allocation5], 1

// kernel: tpu_custom_call.1
$region0: #{tpu_custom_call.1}
  #allocation0 [shape = 'u32[]', space=smem, size = 0x4, offset = 0x4, fixed_abs, tag = 'smem constant byte address 0x4 - core index']
  #allocation1 [shape = 'u32[144,128]{1,0:T(1,128)}', space=vmem, size = 0x12000, scoped, tag = 'internal scratch']
  #allocation2 [shape = 'f32[1]{0:T(128)S(6)}', space=smem, size = 0x200, scoped, tag = 'scoped memory for tpu_custom_call.1']
  %s0 = inlined_call_operand.<no memory space> [shape: f32[1], index: 0, kind: input, shape index: {}]
  %s1 = inlined_call_operand.hbm [shape: f32[16,32], index: 1, kind: input, shape index: {}]
  %s2 = inlined_call_operand.hbm [shape: f32[32,32], index: 2, kind: input, shape index: {}]
  %s3 = inlined_call_operand.vmem [shape: f32[1,32], index: 3, kind: input, shape index: {}]
  %s4 = inlined_call_operand.hbm [shape: f32[16,32], index: 4, kind: output, shape index: {}]
  %s5 = sld [smem:[#allocation0]]
  $region34: #{tpu_custom_call.1} parent=0
    _
  %s7 = ssub.s32 1, %s5
  %s8 = scalar_select 0, %s7, %s5
  %9 = sst [smem:[#allocation2]] %s0
  $region1: #{tpu_custom_call.1} parent=0
    #allocation3 [shape = 'u8[8192]{0}', space=vmem, size = 0x2000, scoped, tag = 'input window, operand 1, single buffered']
    #allocation4 [shape = 's32[1]{0}', space=sflag, size = 0x4, scoped, tag = 'scoped memory for tpu_custom_call.1']
    #allocation5 [shape = 's32[1]{0}', space=sflag, size = 0x4, scoped, tag = 'scoped memory for tpu_custom_call.1']
    #allocation6 [shape = 'u8[16384]{0}', space=vmem, size = 0x4000, scoped, tag = 'input window, operand 2, single buffered']
    #allocation7 [shape = 's32[1]{0}', space=sflag, size = 0x4, scoped, tag = 'scoped memory for tpu_custom_call.1']
    #allocation8 [shape = 'u8[8192]{0}', space=vmem, size = 0x2000, scoped, tag = 'output window, operand 0, single buffered']
    %10 = vsyncpa [#allocation4], 0
    %11 = vsyncpa [#allocation7], 0
    %12 = vsyncpa [#allocation5], 0
    // Predicated region
    $region2: #{tpu_custom_call.1} parent=1 // pred_check
      _
    $region3: #{tpu_custom_call.1} parent=1 // pred_check_branch
      %14 = sbr.rel (0) target = $region5
    $region4: #{tpu_custom_call.1} parent=1 // pred_region
      _
    $region5: #{tpu_custom_call.1} parent=1 // pred_fallthru
      _
    // Predicated region
    $region6: #{tpu_custom_call.1} parent=1 // pred_check
      _
    $region7: #{tpu_custom_call.1} parent=1 // pred_check_branch
      %16 = sbr.rel (0) target = $region9
    $region8: #{tpu_custom_call.1} parent=1 // pred_region
      %s18 = ssub.s32 256, 256
      %19 = vsyncadd [#allocation4], %s18
      %s20 = sshll.u32 [#allocation3], 4
      %s21 = int_to_ptr.vmem [resolvable:$true] %s20
      %26 = dma.hbm_to_vmem [thread:$0]  %s1, 256, %s21, [#allocation4], 128, 128, 8
    $region9: #{tpu_custom_call.1} parent=1 // pred_fallthru
      _
    // Predicated region
    $region10: #{tpu_custom_call.1} parent=1 // pred_check
      _
    $region11: #{tpu_custom_call.1} parent=1 // pred_check_branch
      %28 = sbr.rel (0) target = $region13
    $region12: #{tpu_custom_call.1} parent=1 // pred_region
      %s30 = ssub.s32 512, 512
      %31 = vsyncadd [#allocation7], %s30
      %s32 = sshll.u32 [#allocation6], 4
      %s33 = int_to_ptr.vmem [resolvable:$true] %s32
      %38 = dma.hbm_to_vmem [thread:$0]  %s2, 512, %s33, [#allocation7], 128, 128, 8
    $region13: #{tpu_custom_call.1} parent=1 // pred_fallthru
      _
    // Predicated region
    $region14: #{tpu_custom_call.1} parent=1 // pred_check
      _
    $region15: #{tpu_custom_call.1} parent=1 // pred_check_branch
      %40 = sbr.rel (0) target = $region17
    $region16: #{tpu_custom_call.1} parent=1 // pred_region
      _
    $region17: #{tpu_custom_call.1} parent=1 // pred_fallthru
      _
    // Predicated region
    $region18: #{tpu_custom_call.1} parent=1 // pred_check
      _
    $region19: #{tpu_custom_call.1} parent=1 // pred_check_branch
      %42 = sbr.rel (0) target = $region21
    $region20: #{tpu_custom_call.1} parent=1 // pred_region
      %43 = dma.done [#allocation4], 256
    $region21: #{tpu_custom_call.1} parent=1 // pred_fallthru
      _
    // Predicated region
    $region22: #{tpu_custom_call.1} parent=1 // pred_check
      _
    $region23: #{tpu_custom_call.1} parent=1 // pred_check_branch
      %45 = sbr.rel (0) target = $region25
    $region24: #{tpu_custom_call.1} parent=1 // pred_region
      %46 = dma.done [#allocation7], 512
    $region25: #{tpu_custom_call.1} parent=1 // pred_fallthru
      _
    %s47 = sld [smem:[#allocation2]]
    %s48 = ssub.f32 1.0, %s47
    %v49 = vld [vmem:[#allocation3] sm:$0xff]
    %v50 = vld [vmem:[#allocation3 + $0x8] sm:$0xff]
    %v51 = vld [vmem:[#allocation6] sm:$0xff]
    %v52 = vld [vmem:[#allocation6 + $0x8] sm:$0xff]
    %v53 = vld [vmem:[#allocation6 + $0x10] sm:$0xff]
    %v54 = vld [vmem:[#allocation6 + $0x18] sm:$0xff]
    %v55 = vld [vmem:[%s3] sm:$0x1]
    %v57 = vlaneseq
    %v58 = vshrl.u32 %v57, 7
    %v59 = vsub.s32 0, %v58
    %v60 = vrot.slane %v55, %v59
    %vm62 = vcmask 261120
    %v64 = vsel %vm62, %v49, 0
    %v67 = vsel %vm62, %v50, 0
    %69 = vmatprep.subr.mxu0 0.0
    %70 = vmatpush1.msra.mxu0 %v51
    %71 = vmatprep.subr.mxu0 0.0
    %72 = vmatpush1.msra.mxu0 %v52
    %73 = vmatprep.subr.mxu0 0.0
    %74 = vmatpush1.msra.mxu0 %v53
    %75 = vmatprep.subr.mxu0 0.0
    %76 = vmatpush1.msra.mxu0 %v54
    %77 = vmatprep.subr.mxu0 0.0
    %78 = vmatpush1.msra.mxu0 0.0
    %79 = vmatprep.subr.mxu0 0.0
    %80 = vmatpush1.msra.mxu0 0.0
    %81 = vmatprep.subr.mxu0 0.0
    %82 = vmatpush1.msra.mxu0 0.0
    %83 = vmatprep.subr.mxu0 0.0
    %84 = vmatpush1.msra.mxu0 0.0
    %85 = vmatprep.subr.mxu0 0.0
    %86 = vmatpush1.msra.mxu0 0.0
    %87 = vmatprep.subr.mxu0 0.0
    %88 = vmatpush1.msra.mxu0 0.0
    %89 = vmatprep.subr.mxu0 0.0
    %90 = vmatpush1.msra.mxu0 0.0
    %91 = vmatprep.subr.mxu0 0.0
    %92 = vmatpush1.msra.mxu0 0.0
    %93 = vmatprep.subr.mxu0 0.0
    %94 = vmatpush1.msra.mxu0 0.0
    %95 = vmatprep.subr.mxu0 0.0
    %96 = vmatpush1.msra.mxu0 0.0
    %97 = vmatprep.subr.mxu0 0.0
    %98 = vmatpush1.msra.mxu0 0.0
    %99 = vmatprep.subr.mxu0 0.0
    %100 = vmatpush1.msra.mxu0 0.0
    %101 = vmatprep.subr.mxu0 0.0
    %102 = vmatpush1.msra.mxu0 0.0
    %103 = vmatprep.subr.mxu0 0.0
    %104 = vmatpush1.msra.mxu0 0.0
    %105 = vmatprep.subr.mxu0 0.0
    %106 = vmatpush1.msra.mxu0 0.0
    %107 = vmatprep.subr.mxu0 0.0
    %108 = vmatpush1.msra.mxu0 0.0
    %109 = vmatprep.subr.mxu0 0.0
    %110 = vmatpush1.msra.mxu0 0.0
    %111 = vmatprep.subr.mxu0 0.0
    %112 = vmatpush1.msra.mxu0 0.0
    %113 = vmatprep.subr.mxu0 0.0
    %114 = vmatpush1.msra.mxu0 0.0
    %115 = vmatprep.subr.mxu0 0.0
    %116 = vmatpush1.msra.mxu0 0.0
    %117 = vmatprep.subr.mxu0 0.0
    %118 = vmatpush1.msra.mxu0 0.0
    %119 = vmatprep.subr.mxu0 0.0
    %120 = vmatpush1.msra.mxu0 0.0
    %121 = vmatprep.subr.mxu0 0.0
    %122 = vmatpush1.msra.mxu0 0.0
    %123 = vmatprep.subr.mxu0 0.0
    %124 = vmatpush1.msra.mxu0 0.0
    %125 = vmatprep.subr.mxu0 0.0
    %126 = vmatpush1.msra.mxu0 0.0
    %127 = vmatprep.subr.mxu0 0.0
    %128 = vmatpush1.msra.mxu0 0.0
    %129 = vmatprep.subr.mxu0 0.0
    %130 = vmatpush1.msra.mxu0 0.0
    %131 = vmatprep.subr.mxu0 0.0
    %132 = vmatpush1.msra.mxu0 0.0
    %133 = vmatprep.mubr.f32.mxu0 0.0
    %134 = vmatmul.mubr.f32.gmra.mrb[0].mxu0 %v64
    %v135 = vpop.f32.mrb[0].mxu0
    %v136 = vadd.f32 %v60, %v135
    %v137 = vpop.f32.mrb[0].mxu0
    %138 = vmatprep.mubr.f32.mxu0 0.0
    %139 = vmatmul.mubr.f32.gmra.mrb[0].mxu0 %v67
    %v140 = vpop.f32.mrb[0].mxu0
    %v141 = vadd.f32 %v60, %v140
    %v142 = vpop.f32.mrb[0].mxu0
    %143 = vdwg.mxu0
    %v144 = vmax.f32 %v136, 0.0
    %v145 = vmax.f32 %v141, 0.0
    %v146 = vstv %s47
    %v147 = vmul.f32 %v146, %v144
    %v148 = vmul.f32 %v146, %v145
    %v149 = vstv %s48
    %v150 = vmul.f32 %v149, %v49
    %v151 = vmul.f32 %v149, %v50
    %v152 = vadd.f32 %v147, %v150
    %v153 = vadd.f32 %v148, %v151
    %154 = vst.msk [vmem:[#allocation8] sm:$0xff] %vm62, %v152
    %155 = vst.msk [vmem:[#allocation8 + $0x8] sm:$0xff] %vm62, %v153
    // Predicated region
    $region26: #{tpu_custom_call.1} parent=1 // pred_check
      _
    $region27: #{tpu_custom_call.1} parent=1 // pred_check_branch
      %157 = sbr.rel (0) target = $region29
    $region28: #{tpu_custom_call.1} parent=1 // pred_region
      %s159 = ssub.s32 256, 256
      %160 = vsyncadd [#allocation5], %s159
      %s161 = sshll.u32 [#allocation8], 4
      %s162 = int_to_ptr.vmem [resolvable:$true] %s161
      %167 = dma.vmem_to_hbm [thread:$0]  %s162, 256, %s4, [#allocation5], 128, 128, 8
    $region29: #{tpu_custom_call.1} parent=1 // pred_fallthru
      _
    // Predicated region
    $region30: #{tpu_custom_call.1} parent=1 // pred_check
      _
    $region31: #{tpu_custom_call.1} parent=1 // pred_check_branch
      %169 = sbr.rel (0) target = $region33
    $region32: #{tpu_custom_call.1} parent=1 // pred_region
      %170 = dma.done [#allocation5], 256
    $region33: #{tpu_custom_call.1} parent=1 // pred_fallthru
      _
    %171 = vsyncpa [#allocation4], 1
    %172 = vsyncpa [#allocation7], 1
    %173 = vsyncpa [#allocation5], 1

</llo_original>
